<compile_context>
chip_gen: v7x
topology: tpu7x:2x2x1
jax: 0.10.0
libtpu: 0.0.40
codegen_flags: <defaults>
</compile_context>

<pallas_src>
import jax
import jax.numpy as jnp
from jax.experimental import pallas as pl
from jax.experimental.pallas import tpu as pltpu

HIDDEN = 256
MAX_BLOCK_M = 2048   # rows per grid step when batch is very large (mult. of 16)
MIN_SPLIT_BATCH = 32  # below this, never split the batch across grid steps


def _qnetwork_kernel(
    sa_ref,                           # (block_m, in_dim) f32, [state | action]
    w1_ref, b1_ref,                   # fused layer-1 for both heads: (in_dim, 2H)
    w21_ref, b21_ref,                 # head-1 layer-2
    w22_ref, b22_ref,                 # head-2 layer-2
    w31_ref, w32_ref, b3_ref,         # final projections as rows + packed bias
    out_ref,                          # (block_m, 2): [:,0]=q1, [:,1]=q2
):
    sa = sa_ref[...].astype(jnp.bfloat16)

    # ---- fused layer 1 for both heads: ONE K=16 dot -> (block_m, 2H) f32 ---
    h = jnp.dot(sa, w1_ref[...], preferred_element_type=jnp.float32) + b1_ref[...]
    h = jnp.maximum(h, 0.0)                      # f32 VPU (v5e-safe)
    h1 = h[:, :HIDDEN].astype(jnp.bfloat16)      # slice at 256-lane boundary
    h2 = h[:, HIDDEN:].astype(jnp.bfloat16)

    # ---- layer 2: two independent MXU chains, issued back to back ----------
    g1 = jnp.dot(h1, w21_ref[...], preferred_element_type=jnp.float32) + b21_ref[...]
    g2 = jnp.dot(h2, w22_ref[...], preferred_element_type=jnp.float32) + b22_ref[...]
    g1 = jnp.maximum(g1, 0.0)
    g2 = jnp.maximum(g2, 0.0)

    # ---- layer 3 (256 -> 1) as VPU multiply + lane reduce (no N=1 matmul) --
    q1 = jnp.sum(g1 * w31_ref[...], axis=-1, keepdims=True)   # (block_m, 1) f32
    q2 = jnp.sum(g2 * w32_ref[...], axis=-1, keepdims=True)   # (block_m, 1) f32

    # pack into one lane-contiguous (block_m, 2) write; per-row only, so any
    # padded rows of a partial final block are harmless (discarded by Pallas).
    col = jax.lax.broadcasted_iota(jnp.int32, out_ref.shape, 1)
    out_ref[...] = jnp.where(col == 0, q1, q2) + b3_ref[...]


def pack_qnetwork_params(params):
    """Repack per-head params into the fused / kernel-friendly layout."""
    w1a_, b1a_, w2a_, b2a_, w3a_, b3a_ = params["q1"]
    w1b_, b1b_, w2b_, b2b_, w3b_, b3b_ = params["q2"]

    return {
        "w1": jnp.concatenate([w1a_, w1b_], axis=1).astype(jnp.bfloat16),  # (in_dim, 2H)
        "b1": jnp.concatenate([b1a_, b1b_], axis=1),                       # (1, 2H) f32
        "w2_1": w2a_.astype(jnp.bfloat16),                                 # (H, H)
        "b2_1": b2a_,                                                      # (1, H) f32
        "w2_2": w2b_.astype(jnp.bfloat16),                                 # (H, H)
        "b2_2": b2b_,                                                      # (1, H) f32
        "w3_1": w3a_.T,                                                    # (1, H) f32
        "w3_2": w3b_.T,                                                    # (1, H) f32
        "b3": jnp.concatenate([b3a_, b3b_], axis=1),                       # (1, 2) f32
    }


def _num_tensorcores():
    """2 on chips whose grid axes shard across two TensorCores (v7x), else 1."""
    try:
        kind = jax.devices()[0].device_kind.lower()
    except Exception:
        return 1
    return 2 if ("v7" in kind or "7x" in kind) else 1


def _round_up(x, m):
    return ((x + m - 1) // m) * m


def _pick_block_m(batch):
    if batch > MAX_BLOCK_M:
        return MAX_BLOCK_M
    ntc = _num_tensorcores()
    if ntc > 1 and batch >= MIN_SPLIT_BATCH:
        # >= 2 grid steps so ("parallel",) can shard the batch across both TCs.
        return min(_round_up(pl.cdiv(batch, ntc), 16), MAX_BLOCK_M)
    return batch  # single block; full-dim block is always layout-legal


def qnetwork_forward(state, action, packed):
    """Returns (q1, q2), each (batch, 1) float32."""
    batch = state.shape[0]
    sa = jnp.concatenate([state, action], axis=-1)   # (batch, in_dim) f32, tiny
    in_dim = sa.shape[1]

    block_m = _pick_block_m(batch)
    grid = (pl.cdiv(batch, block_m),)

    def resident(arr):
        # Constant index_map: weights/biases stay VMEM-resident across steps.
        return pl.BlockSpec(arr.shape, lambda i: (0, 0))

    operands = (
        sa,
        packed["w1"], packed["b1"],
        packed["w2_1"], packed["b2_1"],
        packed["w2_2"], packed["b2_2"],
        packed["w3_1"], packed["w3_2"], packed["b3"],
    )
    in_specs = [pl.BlockSpec((block_m, in_dim), lambda i: (i, 0))] + [
        resident(w) for w in operands[1:]
    ]

    q = pl.pallas_call(
        _qnetwork_kernel,
        grid=grid,
        in_specs=in_specs,
        out_specs=pl.BlockSpec((block_m, 2), lambda i: (i, 0)),
        out_shape=jax.ShapeDtypeStruct((batch, 2), jnp.float32),
        compiler_params=pltpu.CompilerParams(dimension_semantics=("parallel",)),
    )(*operands)
    return q[:, 0:1], q[:, 1:2]


# ----------------------------- init & reference ------------------------------

def _xavier_uniform(key, fan_in, fan_out):
    limit = (6.0 / (fan_in + fan_out)) ** 0.5
    return jax.random.uniform(
        key, (fan_in, fan_out), dtype=jnp.float32, minval=-limit, maxval=limit
    )


def init_qnetwork_params(key, state_dim, action_dim, hidden_dim=HIDDEN):
    in_dim = state_dim + action_dim

    def init_mlp(k):
        k1, k2, k3 = jax.random.split(k, 3)
        return (
            _xavier_uniform(k1, in_dim, hidden_dim), jnp.zeros((1, hidden_dim), jnp.float32),
            _xavier_uniform(k2, hidden_dim, hidden_dim), jnp.zeros((1, hidden_dim), jnp.float32),
            _xavier_uniform(k3, hidden_dim, 1), jnp.zeros((1, 1), jnp.float32),
        )

    kq1, kq2 = jax.random.split(key)
    return {"q1": init_mlp(kq1), "q2": init_mlp(kq2)}


def _reference_forward(state, action, pk):
    """Pure-JAX reference implementing the same (bf16-matmul, f32-accum) math."""
    sa = jnp.concatenate([state, action], axis=-1).astype(jnp.bfloat16)
    h = jnp.dot(sa, pk["w1"], preferred_element_type=jnp.float32) + pk["b1"]
    h = jnp.maximum(h, 0.0)
    h1 = h[:, :HIDDEN].astype(jnp.bfloat16)
    h2 = h[:, HIDDEN:].astype(jnp.bfloat16)
    g1 = jnp.maximum(jnp.dot(h1, pk["w2_1"], preferred_element_type=jnp.float32) + pk["b2_1"], 0.0)
    g2 = jnp.maximum(jnp.dot(h2, pk["w2_2"], preferred_element_type=jnp.float32) + pk["b2_2"], 0.0)
    q1 = jnp.sum(g1 * pk["w3_1"], axis=-1, keepdims=True) + pk["b3"][:, 0:1]
    q2 = jnp.sum(g2 * pk["w3_2"], axis=-1, keepdims=True) + pk["b3"][:, 1:2]
    return q1, q2


if __name__ == "__main__":
    key = jax.random.PRNGKey(0)
    k_params, k_state, k_action = jax.random.split(key, 3)

    batch, state_dim, action_dim = 8, 12, 4

    params = init_qnetwork_params(k_params, state_dim, action_dim)
    packed = pack_qnetwork_params(params)

    state = jax.random.normal(k_state, (batch, state_dim), dtype=jnp.float32)
    action = jax.random.normal(k_action, (batch, action_dim), dtype=jnp.float32)

    q1, q2 = qnetwork_forward(state, action, packed)
    q1, q2 = jax.block_until_ready((q1, q2))

    r1, r2 = _reference_forward(state, action, packed)
    assert q1.shape == (batch, 1) and q2.shape == (batch, 1)
    assert jnp.allclose(q1, r1, atol=2e-3, rtol=2e-3)
    assert jnp.allclose(q2, r2, atol=2e-3, rtol=2e-3)

    print("KERNEL_OK")
</pallas_src>

<mosaic_0001>
module attributes {stable_mosaic.version = 11 : i64} {
  func.func @_qnetwork_kernel(%arg0: i32, %arg1: memref<8x16xf32, #tpu.memory_space<vmem>>, %arg2: memref<16x512xbf16, #tpu.memory_space<vmem>>, %arg3: memref<1x512xf32, #tpu.memory_space<vmem>>, %arg4: memref<256x256xbf16, #tpu.memory_space<vmem>>, %arg5: memref<1x256xf32, #tpu.memory_space<vmem>>, %arg6: memref<256x256xbf16, #tpu.memory_space<vmem>>, %arg7: memref<1x256xf32, #tpu.memory_space<vmem>>, %arg8: memref<1x256xf32, #tpu.memory_space<vmem>>, %arg9: memref<1x256xf32, #tpu.memory_space<vmem>>, %arg10: memref<1x2xf32, #tpu.memory_space<vmem>>, %arg11: memref<8x2xf32, #tpu.memory_space<vmem>>) attributes {dimension_semantics = [#tpu.dimension_semantics<parallel>], iteration_bounds = array<i64: 1>, scalar_prefetch = 0 : i64, scratch_operands = 0 : i64, tpu.core_type = #tpu.core_type<tc>, window_params = [{transform_indices = @transform_0, window_bounds = array<i64: 8, 16>}, {pipeline_mode = #tpu.pipeline_mode<synchronous>, transform_indices = @transform_1, window_bounds = array<i64: 16, 512>}, {pipeline_mode = #tpu.pipeline_mode<synchronous>, transform_indices = @transform_2, window_bounds = array<i64: 1, 512>}, {pipeline_mode = #tpu.pipeline_mode<synchronous>, transform_indices = @transform_3, window_bounds = array<i64: 256, 256>}, {pipeline_mode = #tpu.pipeline_mode<synchronous>, transform_indices = @transform_4, window_bounds = array<i64: 1, 256>}, {pipeline_mode = #tpu.pipeline_mode<synchronous>, transform_indices = @transform_5, window_bounds = array<i64: 256, 256>}, {pipeline_mode = #tpu.pipeline_mode<synchronous>, transform_indices = @transform_6, window_bounds = array<i64: 1, 256>}, {pipeline_mode = #tpu.pipeline_mode<synchronous>, transform_indices = @transform_7, window_bounds = array<i64: 1, 256>}, {pipeline_mode = #tpu.pipeline_mode<synchronous>, transform_indices = @transform_8, window_bounds = array<i64: 1, 256>}, {pipeline_mode = #tpu.pipeline_mode<synchronous>, transform_indices = @transform_9, window_bounds = array<i64: 1, 2>}, {transform_indices = @transform_10, window_bounds = array<i64: 8, 2>}]} {
    %c0 = arith.constant 0 : index
    %c0_0 = arith.constant 0 : index
    %0 = vector.load %arg1[%c0, %c0_0] : memref<8x16xf32, #tpu.memory_space<vmem>>, vector<8x16xf32>
    %1 = arith.truncf %0 : vector<8x16xf32> to vector<8x16xbf16>
    %c0_1 = arith.constant 0 : index
    %c0_2 = arith.constant 0 : index
    %2 = vector.load %arg2[%c0_1, %c0_2] : memref<16x512xbf16, #tpu.memory_space<vmem>>, vector<16x512xbf16>
    %cst = arith.constant dense<0.000000e+00> : vector<8x512xf32>
    %3 = tpu.matmul %1, %2, %cst {dimension_numbers = #tpu.dot_dimension_numbers<[1], [0], [0], [1], [0, 0, 1, 1], [], []>} : vector<8x16xbf16>, vector<16x512xbf16>, vector<8x512xf32> -> vector<8x512xf32>
    %c0_3 = arith.constant 0 : index
    %c0_4 = arith.constant 0 : index
    %4 = vector.load %arg3[%c0_3, %c0_4] : memref<1x512xf32, #tpu.memory_space<vmem>>, vector<1x512xf32>
    %5 = vector.broadcast %4 : vector<1x512xf32> to vector<8x512xf32>
    %6 = arith.addf %3, %5 : vector<8x512xf32>
    %cst_5 = arith.constant 0.000000e+00 : f32
    %7 = vector.broadcast %cst_5 : f32 to vector<8x512xf32>
    %8 = arith.maximumf %6, %7 : vector<8x512xf32>
    %9 = vector.extract_strided_slice %8 {offsets = [0, 0], sizes = [8, 256], strides = [1, 1]} : vector<8x512xf32> to vector<8x256xf32>
    %10 = arith.truncf %9 : vector<8x256xf32> to vector<8x256xbf16>
    %11 = vector.extract_strided_slice %8 {offsets = [0, 256], sizes = [8, 256], strides = [1, 1]} : vector<8x512xf32> to vector<8x256xf32>
    %12 = arith.truncf %11 : vector<8x256xf32> to vector<8x256xbf16>
    %c0_6 = arith.constant 0 : index
    %c0_7 = arith.constant 0 : index
    %13 = vector.load %arg4[%c0_6, %c0_7] : memref<256x256xbf16, #tpu.memory_space<vmem>>, vector<256x256xbf16>
    %cst_8 = arith.constant dense<0.000000e+00> : vector<8x256xf32>
    %14 = tpu.matmul %10, %13, %cst_8 {dimension_numbers = #tpu.dot_dimension_numbers<[1], [0], [0], [1], [0, 0, 1, 1], [], []>} : vector<8x256xbf16>, vector<256x256xbf16>, vector<8x256xf32> -> vector<8x256xf32>
    %c0_9 = arith.constant 0 : index
    %c0_10 = arith.constant 0 : index
    %15 = vector.load %arg5[%c0_9, %c0_10] : memref<1x256xf32, #tpu.memory_space<vmem>>, vector<1x256xf32>
    %16 = vector.broadcast %15 : vector<1x256xf32> to vector<8x256xf32>
    %17 = arith.addf %14, %16 : vector<8x256xf32>
    %c0_11 = arith.constant 0 : index
    %c0_12 = arith.constant 0 : index
    %18 = vector.load %arg6[%c0_11, %c0_12] : memref<256x256xbf16, #tpu.memory_space<vmem>>, vector<256x256xbf16>
    %cst_13 = arith.constant dense<0.000000e+00> : vector<8x256xf32>
    %19 = tpu.matmul %12, %18, %cst_13 {dimension_numbers = #tpu.dot_dimension_numbers<[1], [0], [0], [1], [0, 0, 1, 1], [], []>} : vector<8x256xbf16>, vector<256x256xbf16>, vector<8x256xf32> -> vector<8x256xf32>
    %c0_14 = arith.constant 0 : index
    %c0_15 = arith.constant 0 : index
    %20 = vector.load %arg7[%c0_14, %c0_15] : memref<1x256xf32, #tpu.memory_space<vmem>>, vector<1x256xf32>
    %21 = vector.broadcast %20 : vector<1x256xf32> to vector<8x256xf32>
    %22 = arith.addf %19, %21 : vector<8x256xf32>
    %cst_16 = arith.constant 0.000000e+00 : f32
    %23 = vector.broadcast %cst_16 : f32 to vector<8x256xf32>
    %24 = arith.maximumf %17, %23 : vector<8x256xf32>
    %cst_17 = arith.constant 0.000000e+00 : f32
    %25 = vector.broadcast %cst_17 : f32 to vector<8x256xf32>
    %26 = arith.maximumf %22, %25 : vector<8x256xf32>
    %c0_18 = arith.constant 0 : index
    %c0_19 = arith.constant 0 : index
    %27 = vector.load %arg8[%c0_18, %c0_19] : memref<1x256xf32, #tpu.memory_space<vmem>>, vector<1x256xf32>
    %28 = vector.broadcast %27 : vector<1x256xf32> to vector<8x256xf32>
    %29 = arith.mulf %24, %28 : vector<8x256xf32>
    %cst_20 = arith.constant dense<0.000000e+00> : vector<8xf32>
    %30 = vector.multi_reduction <add>, %29, %cst_20 [1] : vector<8x256xf32> to vector<8xf32>
    %31 = vector.shape_cast %30 : vector<8xf32> to vector<8x1xf32>
    %c0_21 = arith.constant 0 : index
    %c0_22 = arith.constant 0 : index
    %32 = vector.load %arg9[%c0_21, %c0_22] : memref<1x256xf32, #tpu.memory_space<vmem>>, vector<1x256xf32>
    %33 = vector.broadcast %32 : vector<1x256xf32> to vector<8x256xf32>
    %34 = arith.mulf %26, %33 : vector<8x256xf32>
    %cst_23 = arith.constant dense<0.000000e+00> : vector<8xf32>
    %35 = vector.multi_reduction <add>, %34, %cst_23 [1] : vector<8x256xf32> to vector<8xf32>
    %36 = vector.shape_cast %35 : vector<8xf32> to vector<8x1xf32>
    %37 = tpu.iota {dimensions = array<i32: 1>} : vector<8x2xi32>
    %c0_i32 = arith.constant 0 : i32
    %38 = vector.broadcast %c0_i32 : i32 to vector<8x2xi32>
    %39 = arith.cmpi eq, %37, %38 : vector<8x2xi32>
    %40 = vector.shape_cast %31 : vector<8x1xf32> to vector<8x1xf32>
    %41 = vector.broadcast %40 : vector<8x1xf32> to vector<8x2xf32>
    %42 = vector.shape_cast %36 : vector<8x1xf32> to vector<8x1xf32>
    %43 = vector.broadcast %42 : vector<8x1xf32> to vector<8x2xf32>
    %44 = arith.select %39, %41, %43 : vector<8x2xi1>, vector<8x2xf32>
    %c0_24 = arith.constant 0 : index
    %c0_25 = arith.constant 0 : index
    %45 = vector.load %arg10[%c0_24, %c0_25] : memref<1x2xf32, #tpu.memory_space<vmem>>, vector<1x2xf32>
    %46 = vector.broadcast %45 : vector<1x2xf32> to vector<8x2xf32>
    %47 = arith.addf %44, %46 : vector<8x2xf32>
    %c0_26 = arith.constant 0 : index
    %c0_27 = arith.constant 0 : index
    %48 = vector.load %arg11[%c0_26, %c0_27] : memref<8x2xf32, #tpu.memory_space<vmem>>, vector<8x2xf32>
    tpu.vector_store %arg11[%c0_26, %c0_27], %47 {strides = array<i32>} : memref<8x2xf32, #tpu.memory_space<vmem>>, vector<8x2xf32>,
    return
  }
  func.func @transform_0(%arg0: i32) -> (i32, i32) {
    %c0_i32 = arith.constant 0 : i32
    %c0_i32_0 = arith.constant 0 : i32
    return %arg0, %c0_i32 : i32, i32
  }
  func.func @transform_1(%arg0: i32) -> (i32, i32) {
    %c0_i32 = arith.constant 0 : i32
    %c0_i32_0 = arith.constant 0 : i32
    %c0_i32_1 = arith.constant 0 : i32
    return %c0_i32, %c0_i32_0 : i32, i32
  }
  func.func @transform_2(%arg0: i32) -> (i32, i32) {
    %c0_i32 = arith.constant 0 : i32
    %c0_i32_0 = arith.constant 0 : i32
    %c0_i32_1 = arith.constant 0 : i32
    return %c0_i32, %c0_i32_0 : i32, i32
  }
  func.func @transform_3(%arg0: i32) -> (i32, i32) {
    %c0_i32 = arith.constant 0 : i32
    %c0_i32_0 = arith.constant 0 : i32
    %c0_i32_1 = arith.constant 0 : i32
    return %c0_i32, %c0_i32_0 : i32, i32
  }
  func.func @transform_4(%arg0: i32) -> (i32, i32) {
    %c0_i32 = arith.constant 0 : i32
    %c0_i32_0 = arith.constant 0 : i32
    %c0_i32_1 = arith.constant 0 : i32
    return %c0_i32, %c0_i32_0 : i32, i32
  }
  func.func @transform_5(%arg0: i32) -> (i32, i32) {
    %c0_i32 = arith.constant 0 : i32
    %c0_i32_0 = arith.constant 0 : i32
    %c0_i32_1 = arith.constant 0 : i32
    return %c0_i32, %c0_i32_0 : i32, i32
  }
  func.func @transform_6(%arg0: i32) -> (i32, i32) {
    %c0_i32 = arith.constant 0 : i32
    %c0_i32_0 = arith.constant 0 : i32
    %c0_i32_1 = arith.constant 0 : i32
    return %c0_i32, %c0_i32_0 : i32, i32
  }
  func.func @transform_7(%arg0: i32) -> (i32, i32) {
    %c0_i32 = arith.constant 0 : i32
    %c0_i32_0 = arith.constant 0 : i32
    %c0_i32_1 = arith.constant 0 : i32
    return %c0_i32, %c0_i32_0 : i32, i32
  }
  func.func @transform_8(%arg0: i32) -> (i32, i32) {
    %c0_i32 = arith.constant 0 : i32
    %c0_i32_0 = arith.constant 0 : i32
    %c0_i32_1 = arith.constant 0 : i32
    return %c0_i32, %c0_i32_0 : i32, i32
  }
  func.func @transform_9(%arg0: i32) -> (i32, i32) {
    %c0_i32 = arith.constant 0 : i32
    %c0_i32_0 = arith.constant 0 : i32
    %c0_i32_1 = arith.constant 0 : i32
    return %c0_i32, %c0_i32_0 : i32, i32
  }
  func.func @transform_10(%arg0: i32) -> (i32, i32) {
    %c0_i32 = arith.constant 0 : i32
    %c0_i32_0 = arith.constant 0 : i32
    return %arg0, %c0_i32 : i32, i32
  }
}

</mosaic_0001>

<llo_original>
// kernel: tpu_custom_call.1
$region0: #{tpu_custom_call.1}
  #allocation0 [shape = 'u32[]', space=smem, size = 0x4, offset = 0x4, fixed_abs, tag = 'smem constant byte address 0x4 - core index']
  #allocation1 [shape = 'u32[144,128]{1,0:T(1,128)}', space=vmem, size = 0x12000, scoped, tag = 'internal scratch']
  %s0 = inlined_call_operand.hbm [shape: f32[8,16], index: 0, kind: input, shape index: {}]
  %s1 = inlined_call_operand.hbm [shape: bf16[16,512], index: 1, kind: input, shape index: {}]
  %s2 = inlined_call_operand.vmem [shape: f32[1,512], index: 2, kind: input, shape index: {}]
  %s3 = inlined_call_operand.hbm [shape: bf16[256,256], index: 3, kind: input, shape index: {}]
  %s4 = inlined_call_operand.vmem [shape: f32[1,256], index: 4, kind: input, shape index: {}]
  %s5 = inlined_call_operand.hbm [shape: bf16[256,256], index: 5, kind: input, shape index: {}]
  %s6 = inlined_call_operand.vmem [shape: f32[1,256], index: 6, kind: input, shape index: {}]
  %s7 = inlined_call_operand.vmem [shape: f32[1,256], index: 7, kind: input, shape index: {}]
  %s8 = inlined_call_operand.vmem [shape: f32[1,256], index: 8, kind: input, shape index: {}]
  %s9 = inlined_call_operand.vmem [shape: f32[1,2], index: 9, kind: input, shape index: {}]
  %s10 = inlined_call_operand.vmem [shape: f32[8,2], index: 10, kind: output, shape index: {}]
  %s11 = sld [smem:[#allocation0]]
  $region66: #{tpu_custom_call.1} parent=0
    _
  %s13 = ssub.s32 1, %s11
  %s14 = scalar_select 0, %s13, %s11
  $region1: #{tpu_custom_call.1} parent=0
    #allocation2 [shape = 'u8[4096]{0}', space=vmem, size = 0x1000, scoped, tag = 'input window, operand 0, single buffered']
    #allocation3 [shape = 's32[1]{0}', space=sflag, size = 0x4, scoped, tag = 'scoped memory for tpu_custom_call.1']
    #allocation4 [shape = 'u8[16384]{0}', space=vmem, size = 0x4000, scoped, tag = 'input window, operand 1, single buffered']
    #allocation5 [shape = 's32[1]{0}', space=sflag, size = 0x4, scoped, tag = 'scoped memory for tpu_custom_call.1']
    #allocation6 [shape = 'u8[131072]{0}', space=vmem, size = 0x20000, scoped, tag = 'input window, operand 3, single buffered']
    #allocation7 [shape = 'u8[131072]{0}', space=vmem, size = 0x20000, scoped, tag = 'input window, operand 5, single buffered']
    #allocation8 [shape = 's32[1]{0}', space=sflag, size = 0x4, scoped, tag = 'scoped memory for tpu_custom_call.1']
    %15 = vsyncpa [#allocation3], 0
    %16 = vsyncpa [#allocation5], 0
    %17 = vsyncpa [#allocation8], 0
    // Predicated region
    $region2: #{tpu_custom_call.1} parent=1 // pred_check
      _
    $region3: #{tpu_custom_call.1} parent=1 // pred_check_branch
      %19 = sbr.rel (0) target = $region5
    $region4: #{tpu_custom_call.1} parent=1 // pred_region
      %s21 = ssub.s32 128, 128
      %22 = vsyncadd [#allocation3], %s21
      %s24 = sshll.u32 [#allocation2], 4
      %s25 = int_to_ptr.vmem [resolvable:$true] %s24
      %27 = dma.hbm_to_vmem [thread:$0]  %s0, 128, %s25, [#allocation3]
    $region5: #{tpu_custom_call.1} parent=1 // pred_fallthru
      _
    // Predicated region
    $region6: #{tpu_custom_call.1} parent=1 // pred_check
      _
    $region7: #{tpu_custom_call.1} parent=1 // pred_check_branch
      %29 = sbr.rel (0) target = $region9
    $region8: #{tpu_custom_call.1} parent=1 // pred_region
      %s31 = ssub.s32 512, 512
      %32 = vsyncadd [#allocation5], %s31
      %s33 = sshll.u32 [#allocation4], 4
      %s34 = int_to_ptr.vmem [resolvable:$true] %s33
      %39 = dma.hbm_to_vmem [thread:$0]  %s1, 512, %s34, [#allocation5], 256, 256, 16
    $region9: #{tpu_custom_call.1} parent=1 // pred_fallthru
      _
    // Predicated region
    $region10: #{tpu_custom_call.1} parent=1 // pred_check
      _
    $region11: #{tpu_custom_call.1} parent=1 // pred_check_branch
      %41 = sbr.rel (0) target = $region13
    $region12: #{tpu_custom_call.1} parent=1 // pred_region
      _
    $region13: #{tpu_custom_call.1} parent=1 // pred_fallthru
      _
    // Predicated region
    $region14: #{tpu_custom_call.1} parent=1 // pred_check
      _
    $region15: #{tpu_custom_call.1} parent=1 // pred_check_branch
      %43 = sbr.rel (0) target = $region17
    $region16: #{tpu_custom_call.1} parent=1 // pred_region
      %s45 = ssub.s32 4096, 4096
      %46 = vsyncadd [#allocation5], %s45
      %s47 = sshll.u32 [#allocation6], 4
      %s48 = int_to_ptr.vmem [resolvable:$true] %s47
      %53 = dma.hbm_to_vmem [thread:$0]  %s3, 4096, %s48, [#allocation5], 128, 128, 8
    $region17: #{tpu_custom_call.1} parent=1 // pred_fallthru
      _
    // Predicated region
    $region18: #{tpu_custom_call.1} parent=1 // pred_check
      _
    $region19: #{tpu_custom_call.1} parent=1 // pred_check_branch
      %55 = sbr.rel (0) target = $region21
    $region20: #{tpu_custom_call.1} parent=1 // pred_region
      _
    $region21: #{tpu_custom_call.1} parent=1 // pred_fallthru
      _
    // Predicated region
    $region22: #{tpu_custom_call.1} parent=1 // pred_check
      _
    $region23: #{tpu_custom_call.1} parent=1 // pred_check_branch
      %57 = sbr.rel (0) target = $region25
    $region24: #{tpu_custom_call.1} parent=1 // pred_region
      %s59 = ssub.s32 4096, 4096
      %60 = vsyncadd [#allocation8], %s59
      %s61 = sshll.u32 [#allocation7], 4
      %s62 = int_to_ptr.vmem [resolvable:$true] %s61
      %67 = dma.hbm_to_vmem [thread:$0]  %s5, 4096, %s62, [#allocation8], 128, 128, 8
    $region25: #{tpu_custom_call.1} parent=1 // pred_fallthru
      _
    // Predicated region
    $region26: #{tpu_custom_call.1} parent=1 // pred_check
      _
    $region27: #{tpu_custom_call.1} parent=1 // pred_check_branch
      %69 = sbr.rel (0) target = $region29
    $region28: #{tpu_custom_call.1} parent=1 // pred_region
      _
    $region29: #{tpu_custom_call.1} parent=1 // pred_fallthru
      _
    // Predicated region
    $region30: #{tpu_custom_call.1} parent=1 // pred_check
      _
    $region31: #{tpu_custom_call.1} parent=1 // pred_check_branch
      %71 = sbr.rel (0) target = $region33
    $region32: #{tpu_custom_call.1} parent=1 // pred_region
      _
    $region33: #{tpu_custom_call.1} parent=1 // pred_fallthru
      _
    // Predicated region
    $region34: #{tpu_custom_call.1} parent=1 // pred_check
      _
    $region35: #{tpu_custom_call.1} parent=1 // pred_check_branch
      %73 = sbr.rel (0) target = $region37
    $region36: #{tpu_custom_call.1} parent=1 // pred_region
      _
    $region37: #{tpu_custom_call.1} parent=1 // pred_fallthru
      _
    // Predicated region
    $region38: #{tpu_custom_call.1} parent=1 // pred_check
      _
    $region39: #{tpu_custom_call.1} parent=1 // pred_check_branch
      %75 = sbr.rel (0) target = $region41
    $region40: #{tpu_custom_call.1} parent=1 // pred_region
      _
    $region41: #{tpu_custom_call.1} parent=1 // pred_fallthru
      _
    // Predicated region
    $region42: #{tpu_custom_call.1} parent=1 // pred_check
      _
    $region43: #{tpu_custom_call.1} parent=1 // pred_check_branch
      %77 = sbr.rel (0) target = $region45
    $region44: #{tpu_custom_call.1} parent=1 // pred_region
      %78 = dma.done [#allocation3], 128
    $region45: #{tpu_custom_call.1} parent=1 // pred_fallthru
      _
    // Predicated region
    $region46: #{tpu_custom_call.1} parent=1 // pred_check
      _
    $region47: #{tpu_custom_call.1} parent=1 // pred_check_branch
      %80 = sbr.rel (0) target = $region49
    $region48: #{tpu_custom_call.1} parent=1 // pred_region
      %81 = dma.done [#allocation5], 512
    $region49: #{tpu_custom_call.1} parent=1 // pred_fallthru
      _
    // Predicated region
    $region50: #{tpu_custom_call.1} parent=1 // pred_check
      _
    $region51: #{tpu_custom_call.1} parent=1 // pred_check_branch
      %83 = sbr.rel (0) target = $region53
    $region52: #{tpu_custom_call.1} parent=1 // pred_region
      %84 = dma.done [#allocation5], 4096
    $region53: #{tpu_custom_call.1} parent=1 // pred_fallthru
      _
    // Predicated region
    $region54: #{tpu_custom_call.1} parent=1 // pred_check
      _
    $region55: #{tpu_custom_call.1} parent=1 // pred_check_branch
      %86 = sbr.rel (0) target = $region57
    $region56: #{tpu_custom_call.1} parent=1 // pred_region
      %87 = dma.done [#allocation8], 4096
    $region57: #{tpu_custom_call.1} parent=1 // pred_fallthru
      _
    %v89 = vld [vmem:[#allocation2] sm:$0xff]
    %v90 = vpack.c.bf16 %v89, %v89
    %v91 = vld [vmem:[#allocation4] sm:$0xff]
    %v92 = vld [vmem:[#allocation4 + $0x8] sm:$0xff]
    %v93 = vld [vmem:[#allocation4 + $0x10] sm:$0xff]
    %v94 = vld [vmem:[#allocation4 + $0x18] sm:$0xff]
    %v95 = vld [vmem:[%s2] sm:$0xf]
    %v97 = vlaneseq
    %v98 = vshrl.u32 %v97, 7
    %v99 = vsub.s32 0, %v98
    %v100 = vrot.slane %v95, %v99
    %v101 = vlaneseq
    %v102 = vshrl.u32 %v101, 7
    %v103 = vsub.s32 1, %v102
    %v104 = vrot.slane %v95, %v103
    %v105 = vlaneseq
    %v106 = vshrl.u32 %v105, 7
    %v107 = vsub.s32 2, %v106
    %v108 = vrot.slane %v95, %v107
    %v109 = vlaneseq
    %v110 = vshrl.u32 %v109, 7
    %v111 = vsub.s32 3, %v110
    %v112 = vrot.slane %v95, %v111
    %v121 = vunpack.c.l.b16 %v91
    %v122 = vunpack.c.h.b16 %v91
    %v123 = vunpack.c.l.b16 %v92
    %v124 = vunpack.c.h.b16 %v92
    %v125 = vunpack.c.l.b16 %v93
    %v126 = vunpack.c.h.b16 %v93
    %v127 = vunpack.c.l.b16 %v94
    %v128 = vunpack.c.h.b16 %v94
    %v129 = vpack.c.b16 %v125, %v121
    %v130 = vpack.c.b16 %v126, %v122
    %v131 = vpack.c.b16 %v127, %v123
    %v132 = vpack.c.b16 %v128, %v124
    %vm137 = vcmask 130048
    %v139 = vsel %vm137, %v90, 0
    %141 = vmatprep.subr.bf16.mxu0 %v130
    %142 = vmatpush1.bf16.msra.mxu0 %v129
    %143 = vmatprep.subr.bf16.mxu0 0
    %144 = vmatpush1.bf16.msra.mxu0 0
    %145 = vmatprep.subr.bf16.mxu0 0
    %146 = vmatpush1.bf16.msra.mxu0 0
    %147 = vmatprep.subr.bf16.mxu0 0
    %148 = vmatpush1.bf16.msra.mxu0 0
    %149 = vmatprep.subr.bf16.mxu0 0
    %150 = vmatpush1.bf16.msra.mxu0 0
    %151 = vmatprep.subr.bf16.mxu0 0
    %152 = vmatpush1.bf16.msra.mxu0 0
    %153 = vmatprep.subr.bf16.mxu0 0
    %154 = vmatpush1.bf16.msra.mxu0 0
    %155 = vmatprep.subr.bf16.mxu0 0
    %156 = vmatpush1.bf16.msra.mxu0 0
    %157 = vmatprep.subr.bf16.mxu0 0
    %158 = vmatpush1.bf16.msra.mxu0 0
    %159 = vmatprep.subr.bf16.mxu0 0
    %160 = vmatpush1.bf16.msra.mxu0 0
    %161 = vmatprep.subr.bf16.mxu0 0
    %162 = vmatpush1.bf16.msra.mxu0 0
    %163 = vmatprep.subr.bf16.mxu0 0
    %164 = vmatpush1.bf16.msra.mxu0 0
    %165 = vmatprep.subr.bf16.mxu0 0
    %166 = vmatpush1.bf16.msra.mxu0 0
    %167 = vmatprep.subr.bf16.mxu0 0
    %168 = vmatpush1.bf16.msra.mxu0 0
    %169 = vmatprep.subr.bf16.mxu0 0
    %170 = vmatpush1.bf16.msra.mxu0 0
    %171 = vmatprep.subr.bf16.mxu0 0
    %172 = vmatpush1.bf16.msra.mxu0 0
    %173 = vmatprep.mubr.bf16.mxu0 0
    %174 = vmatmul.mubr.bf16.gmra.mrb[0].mxu0 %v139
    %v175 = vpop.f32.mrb[0].mxu0
    %v176 = vadd.f32 %v100, %v175
    %v177 = vpop.f32.mrb[0].mxu0
    %v178 = vadd.f32 %v104, %v177
    %v179 = vpop.f32.mrb[0].mxu0
    %v180 = vpop.f32.mrb[0].mxu0
    %181 = vdwg.mxu0
    %182 = vmatprep.subr.bf16.mxu0 %v132
    %183 = vmatpush1.bf16.msra.mxu0 %v131
    %184 = vmatprep.subr.bf16.mxu0 0
    %185 = vmatpush1.bf16.msra.mxu0 0
    %186 = vmatprep.subr.bf16.mxu0 0
    %187 = vmatpush1.bf16.msra.mxu0 0
    %188 = vmatprep.subr.bf16.mxu0 0
    %189 = vmatpush1.bf16.msra.mxu0 0
    %190 = vmatprep.subr.bf16.mxu0 0
    %191 = vmatpush1.bf16.msra.mxu0 0
    %192 = vmatprep.subr.bf16.mxu0 0
    %193 = vmatpush1.bf16.msra.mxu0 0
    %194 = vmatprep.subr.bf16.mxu0 0
    %195 = vmatpush1.bf16.msra.mxu0 0
    %196 = vmatprep.subr.bf16.mxu0 0
    %197 = vmatpush1.bf16.msra.mxu0 0
    %198 = vmatprep.subr.bf16.mxu0 0
    %199 = vmatpush1.bf16.msra.mxu0 0
    %200 = vmatprep.subr.bf16.mxu0 0
    %201 = vmatpush1.bf16.msra.mxu0 0
    %202 = vmatprep.subr.bf16.mxu0 0
    %203 = vmatpush1.bf16.msra.mxu0 0
    %204 = vmatprep.subr.bf16.mxu0 0
    %205 = vmatpush1.bf16.msra.mxu0 0
    %206 = vmatprep.subr.bf16.mxu0 0
    %207 = vmatpush1.bf16.msra.mxu0 0
    %208 = vmatprep.subr.bf16.mxu0 0
    %209 = vmatpush1.bf16.msra.mxu0 0
    %210 = vmatprep.subr.bf16.mxu0 0
    %211 = vmatpush1.bf16.msra.mxu0 0
    %212 = vmatprep.subr.bf16.mxu0 0
    %213 = vmatpush1.bf16.msra.mxu0 0
    %214 = vmatprep.mubr.bf16.mxu0 0
    %215 = vmatmul.mubr.bf16.gmra.mrb[0].mxu0 %v139
    %v216 = vpop.f32.mrb[0].mxu0
    %v217 = vadd.f32 %v108, %v216
    %v218 = vpop.f32.mrb[0].mxu0
    %v219 = vadd.f32 %v112, %v218
    %v220 = vpop.f32.mrb[0].mxu0
    %v221 = vpop.f32.mrb[0].mxu0
    %222 = vdwg.mxu0
    %v223 = vmax.f32 %v176, 0.0
    %v224 = vmax.f32 %v178, 0.0
    %v225 = vmax.f32 %v217, 0.0
    %v226 = vmax.f32 %v219, 0.0
    %v227 = vpack.c.bf16 %v223, %v223
    %v228 = vpack.c.bf16 %v224, %v224
    %v229 = vpack.c.bf16 %v225, %v225
    %v230 = vpack.c.bf16 %v226, %v226
    %v231 = vld [vmem:[#allocation6] sm:$0xff]
    %v232 = vld [vmem:[#allocation6 + $0x8] sm:$0xff]
    %v233 = vld [vmem:[#allocation6 + $0x10] sm:$0xff]
    %v234 = vld [vmem:[#allocation6 + $0x18] sm:$0xff]
    %v235 = vld [vmem:[#allocation6 + $0x20] sm:$0xff]
    %v236 = vld [vmem:[#allocation6 + $0x28] sm:$0xff]
    %v237 = vld [vmem:[#allocation6 + $0x30] sm:$0xff]
    %v238 = vld [vmem:[#allocation6 + $0x38] sm:$0xff]
    %v239 = vld [vmem:[#allocation6 + $0x40] sm:$0xff]
    %v240 = vld [vmem:[#allocation6 + $0x48] sm:$0xff]
    %v241 = vld [vmem:[#allocation6 + $0x50] sm:$0xff]
    %v242 = vld [vmem:[#allocation6 + $0x58] sm:$0xff]
    %v243 = vld [vmem:[#allocation6 + $0x60] sm:$0xff]
    %v244 = vld [vmem:[#allocation6 + $0x68] sm:$0xff]
    %v245 = vld [vmem:[#allocation6 + $0x70] sm:$0xff]
    %v246 = vld [vmem:[#allocation6 + $0x78] sm:$0xff]
    %v247 = vld [vmem:[#allocation6 + $0x80] sm:$0xff]
    %v248 = vld [vmem:[#allocation6 + $0x88] sm:$0xff]
    %v249 = vld [vmem:[#allocation6 + $0x90] sm:$0xff]
    %v250 = vld [vmem:[#allocation6 + $0x98] sm:$0xff]
    %v251 = vld [vmem:[#allocation6 + $0xa0] sm:$0xff]
    %v252 = vld [vmem:[#allocation6 + $0xa8] sm:$0xff]
    %v253 = vld [vmem:[#allocation6 + $0xb0] sm:$0xff]
    %v254 = vld [vmem:[#allocation6 + $0xb8] sm:$0xff]
    %v255 = vld [vmem:[#allocation6 + $0xc0] sm:$0xff]
    %v256 = vld [vmem:[#allocation6 + $0xc8] sm:$0xff]
    %v257 = vld [vmem:[#allocation6 + $0xd0] sm:$0xff]
    %v258 = vld [vmem:[#allocation6 + $0xd8] sm:$0xff]
    %v259 = vld [vmem:[#allocation6 + $0xe0] sm:$0xff]
    %v260 = vld [vmem:[#allocation6 + $0xe8] sm:$0xff]
    %v261 = vld [vmem:[#allocation6 + $0xf0] sm:$0xff]
    %v262 = vld [vmem:[#allocation6 + $0xf8] sm:$0xff]
    %v263 = vld [vmem:[%s4] sm:$0x3]
    %v265 = vlaneseq
    %v266 = vshrl.u32 %v265, 7
    %v267 = vsub.s32 0, %v266
    %v268 = vrot.slane %v263, %v267
    %v269 = vlaneseq
    %v270 = vshrl.u32 %v269, 7
    %v271 = vsub.s32 1, %v270
    %v272 = vrot.slane %v263, %v271
    %v307 = vunpack.c.l.b16 %v231
    %v308 = vunpack.c.h.b16 %v231
    %v309 = vunpack.c.l.b16 %v232
    %v310 = vunpack.c.h.b16 %v232
    %v311 = vunpack.c.l.b16 %v233
    %v312 = vunpack.c.h.b16 %v233
    %v313 = vunpack.c.l.b16 %v234
    %v314 = vunpack.c.h.b16 %v234
    %v315 = vunpack.c.l.b16 %v235
    %v316 = vunpack.c.h.b16 %v235
    %v317 = vunpack.c.l.b16 %v236
    %v318 = vunpack.c.h.b16 %v236
    %v319 = vunpack.c.l.b16 %v237
    %v320 = vunpack.c.h.b16 %v237
    %v321 = vunpack.c.l.b16 %v238
    %v322 = vunpack.c.h.b16 %v238
    %v323 = vunpack.c.l.b16 %v239
    %v324 = vunpack.c.h.b16 %v239
    %v325 = vunpack.c.l.b16 %v240
    %v326 = vunpack.c.h.b16 %v240
    %v327 = vunpack.c.l.b16 %v241
    %v328 = vunpack.c.h.b16 %v241
    %v329 = vunpack.c.l.b16 %v242
    %v330 = vunpack.c.h.b16 %v242
    %v331 = vunpack.c.l.b16 %v243
    %v332 = vunpack.c.h.b16 %v243
    %v333 = vunpack.c.l.b16 %v244
    %v334 = vunpack.c.h.b16 %v244
    %v335 = vunpack.c.l.b16 %v245
    %v336 = vunpack.c.h.b16 %v245
    %v337 = vunpack.c.l.b16 %v246
    %v338 = vunpack.c.h.b16 %v246
    %v339 = vunpack.c.l.b16 %v247
    %v340 = vunpack.c.h.b16 %v247
    %v341 = vunpack.c.l.b16 %v248
    %v342 = vunpack.c.h.b16 %v248
    %v343 = vunpack.c.l.b16 %v249
    %v344 = vunpack.c.h.b16 %v249
    %v345 = vunpack.c.l.b16 %v250
    %v346 = vunpack.c.h.b16 %v250
    %v347 = vunpack.c.l.b16 %v251
    %v348 = vunpack.c.h.b16 %v251
    %v349 = vunpack.c.l.b16 %v252
    %v350 = vunpack.c.h.b16 %v252
    %v351 = vunpack.c.l.b16 %v253
    %v352 = vunpack.c.h.b16 %v253
    %v353 = vunpack.c.l.b16 %v254
    %v354 = vunpack.c.h.b16 %v254
    %v355 = vunpack.c.l.b16 %v255
    %v356 = vunpack.c.h.b16 %v255
    %v357 = vunpack.c.l.b16 %v256
    %v358 = vunpack.c.h.b16 %v256
    %v359 = vunpack.c.l.b16 %v257
    %v360 = vunpack.c.h.b16 %v257
    %v361 = vunpack.c.l.b16 %v258
    %v362 = vunpack.c.h.b16 %v258
    %v363 = vunpack.c.l.b16 %v259
    %v364 = vunpack.c.h.b16 %v259
    %v365 = vunpack.c.l.b16 %v260
    %v366 = vunpack.c.h.b16 %v260
    %v367 = vunpack.c.l.b16 %v261
    %v368 = vunpack.c.h.b16 %v261
    %v369 = vunpack.c.l.b16 %v262
    %v370 = vunpack.c.h.b16 %v262
    %v371 = vpack.c.b16 %v309, %v307
    %v372 = vpack.c.b16 %v310, %v308
    %v373 = vpack.c.b16 %v313, %v311
    %v374 = vpack.c.b16 %v314, %v312
    %v375 = vpack.c.b16 %v317, %v315
    %v376 = vpack.c.b16 %v318, %v316
    %v377 = vpack.c.b16 %v321, %v319
    %v378 = vpack.c.b16 %v322, %v320
    %v379 = vpack.c.b16 %v325, %v323
    %v380 = vpack.c.b16 %v326, %v324
    %v381 = vpack.c.b16 %v329, %v327
    %v382 = vpack.c.b16 %v330, %v328
    %v383 = vpack.c.b16 %v333, %v331
    %v384 = vpack.c.b16 %v334, %v332
    %v385 = vpack.c.b16 %v337, %v335
    %v386 = vpack.c.b16 %v338, %v336
    %v387 = vpack.c.b16 %v341, %v339
    %v388 = vpack.c.b16 %v342, %v340
    %v389 = vpack.c.b16 %v345, %v343
    %v390 = vpack.c.b16 %v346, %v344
    %v391 = vpack.c.b16 %v349, %v347
    %v392 = vpack.c.b16 %v350, %v348
    %v393 = vpack.c.b16 %v353, %v351
    %v394 = vpack.c.b16 %v354, %v352
    %v395 = vpack.c.b16 %v357, %v355
    %v396 = vpack.c.b16 %v358, %v356
    %v397 = vpack.c.b16 %v361, %v359
    %v398 = vpack.c.b16 %v362, %v360
    %v399 = vpack.c.b16 %v365, %v363
    %v400 = vpack.c.b16 %v366, %v364
    %v401 = vpack.c.b16 %v369, %v367
    %v402 = vpack.c.b16 %v370, %v368
    %435 = vmatprep.subr.bf16.mxu0 %v372
    %436 = vmatpush1.bf16.msra.mxu0 %v371
    %437 = vmatprep.subr.bf16.mxu0 %v374
    %438 = vmatpush1.bf16.msra.mxu0 %v373
    %439 = vmatprep.subr.bf16.mxu0 %v376
    %440 = vmatpush1.bf16.msra.mxu0 %v375
    %441 = vmatprep.subr.bf16.mxu0 %v378
    %442 = vmatpush1.bf16.msra.mxu0 %v377
    %443 = vmatprep.subr.bf16.mxu0 %v380
    %444 = vmatpush1.bf16.msra.mxu0 %v379
    %445 = vmatprep.subr.bf16.mxu0 %v382
    %446 = vmatpush1.bf16.msra.mxu0 %v381
    %447 = vmatprep.subr.bf16.mxu0 %v384
    %448 = vmatpush1.bf16.msra.mxu0 %v383
    %449 = vmatprep.subr.bf16.mxu0 %v386
    %450 = vmatpush1.bf16.msra.mxu0 %v385
    %451 = vmatprep.subr.bf16.mxu0 %v388
    %452 = vmatpush1.bf16.msra.mxu0 %v387
    %453 = vmatprep.subr.bf16.mxu0 %v390
    %454 = vmatpush1.bf16.msra.mxu0 %v389
    %455 = vmatprep.subr.bf16.mxu0 %v392
    %456 = vmatpush1.bf16.msra.mxu0 %v391
    %457 = vmatprep.subr.bf16.mxu0 %v394
    %458 = vmatpush1.bf16.msra.mxu0 %v393
    %459 = vmatprep.subr.bf16.mxu0 %v396
    %460 = vmatpush1.bf16.msra.mxu0 %v395
    %461 = vmatprep.subr.bf16.mxu0 %v398
    %462 = vmatpush1.bf16.msra.mxu0 %v397
    %463 = vmatprep.subr.bf16.mxu0 %v400
    %464 = vmatpush1.bf16.msra.mxu0 %v399
    %465 = vmatprep.subr.bf16.mxu0 %v402
    %466 = vmatpush1.bf16.msra.mxu0 %v401
    %467 = vmatprep.mubr.bf16.mxu0 %v228
    %468 = vmatmul.mubr.bf16.gmra.mrb[0].mxu0 %v227
    %v469 = vpop.f32.mrb[0].mxu0
    %v470 = vadd.f32 %v268, %v469
    %v471 = vpop.f32.mrb[0].mxu0
    %v472 = vadd.f32 %v272, %v471
    %v473 = vpop.f32.mrb[0].mxu0
    %v474 = vpop.f32.mrb[0].mxu0
    %475 = vdwg.mxu0
    %v476 = vld [vmem:[#allocation7] sm:$0xff]
    %v477 = vld [vmem:[#allocation7 + $0x8] sm:$0xff]
    %v478 = vld [vmem:[#allocation7 + $0x10] sm:$0xff]
    %v479 = vld [vmem:[#allocation7 + $0x18] sm:$0xff]
    %v480 = vld [vmem:[#allocation7 + $0x20] sm:$0xff]
    %v481 = vld [vmem:[#allocation7 + $0x28] sm:$0xff]
    %v482 = vld [vmem:[#allocation7 + $0x30] sm:$0xff]
    %v483 = vld [vmem:[#allocation7 + $0x38] sm:$0xff]
    %v484 = vld [vmem:[#allocation7 + $0x40] sm:$0xff]
    %v485 = vld [vmem:[#allocation7 + $0x48] sm:$0xff]
    %v486 = vld [vmem:[#allocation7 + $0x50] sm:$0xff]
    %v487 = vld [vmem:[#allocation7 + $0x58] sm:$0xff]
    %v488 = vld [vmem:[#allocation7 + $0x60] sm:$0xff]
    %v489 = vld [vmem:[#allocation7 + $0x68] sm:$0xff]
    %v490 = vld [vmem:[#allocation7 + $0x70] sm:$0xff]
    %v491 = vld [vmem:[#allocation7 + $0x78] sm:$0xff]
    %v492 = vld [vmem:[#allocation7 + $0x80] sm:$0xff]
    %v493 = vld [vmem:[#allocation7 + $0x88] sm:$0xff]
    %v494 = vld [vmem:[#allocation7 + $0x90] sm:$0xff]
    %v495 = vld [vmem:[#allocation7 + $0x98] sm:$0xff]
    %v496 = vld [vmem:[#allocation7 + $0xa0] sm:$0xff]
    %v497 = vld [vmem:[#allocation7 + $0xa8] sm:$0xff]
    %v498 = vld [vmem:[#allocation7 + $0xb0] sm:$0xff]
    %v499 = vld [vmem:[#allocation7 + $0xb8] sm:$0xff]
    %v500 = vld [vmem:[#allocation7 + $0xc0] sm:$0xff]
    %v501 = vld [vmem:[#allocation7 + $0xc8] sm:$0xff]
    %v502 = vld [vmem:[#allocation7 + $0xd0] sm:$0xff]
    %v503 = vld [vmem:[#allocation7 + $0xd8] sm:$0xff]
    %v504 = vld [vmem:[#allocation7 + $0xe0] sm:$0xff]
    %v505 = vld [vmem:[#allocation7 + $0xe8] sm:$0xff]
    %v506 = vld [vmem:[#allocation7 + $0xf0] sm:$0xff]
    %v507 = vld [vmem:[#allocation7 + $0xf8] sm:$0xff]
    %v508 = vld [vmem:[%s6] sm:$0x3]
    %v510 = vlaneseq
    %v511 = vshrl.u32 %v510, 7
    %v512 = vsub.s32 0, %v511
    %v513 = vrot.slane %v508, %v512
    %v514 = vlaneseq
    %v515 = vshrl.u32 %v514, 7
    %v516 = vsub.s32 1, %v515
    %v517 = vrot.slane %v508, %v516
    %v552 = vunpack.c.l.b16 %v476
    %v553 = vunpack.c.h.b16 %v476
    %v554 = vunpack.c.l.b16 %v477
    %v555 = vunpack.c.h.b16 %v477
    %v556 = vunpack.c.l.b16 %v478
    %v557 = vunpack.c.h.b16 %v478
    %v558 = vunpack.c.l.b16 %v479
    %v559 = vunpack.c.h.b16 %v479
    %v560 = vunpack.c.l.b16 %v480
    %v561 = vunpack.c.h.b16 %v480
    %v562 = vunpack.c.l.b16 %v481
    %v563 = vunpack.c.h.b16 %v481
    %v564 = vunpack.c.l.b16 %v482
    %v565 = vunpack.c.h.b16 %v482
    %v566 = vunpack.c.l.b16 %v483
    %v567 = vunpack.c.h.b16 %v483
    %v568 = vunpack.c.l.b16 %v484
    %v569 = vunpack.c.h.b16 %v484
    %v570 = vunpack.c.l.b16 %v485
    %v571 = vunpack.c.h.b16 %v485
    %v572 = vunpack.c.l.b16 %v486
    %v573 = vunpack.c.h.b16 %v486
    %v574 = vunpack.c.l.b16 %v487
    %v575 = vunpack.c.h.b16 %v487
    %v576 = vunpack.c.l.b16 %v488
    %v577 = vunpack.c.h.b16 %v488
    %v578 = vunpack.c.l.b16 %v489
    %v579 = vunpack.c.h.b16 %v489
    %v580 = vunpack.c.l.b16 %v490
    %v581 = vunpack.c.h.b16 %v490
    %v582 = vunpack.c.l.b16 %v491
    %v583 = vunpack.c.h.b16 %v491
    %v584 = vunpack.c.l.b16 %v492
    %v585 = vunpack.c.h.b16 %v492
    %v586 = vunpack.c.l.b16 %v493
    %v587 = vunpack.c.h.b16 %v493
    %v588 = vunpack.c.l.b16 %v494
    %v589 = vunpack.c.h.b16 %v494
    %v590 = vunpack.c.l.b16 %v495
    %v591 = vunpack.c.h.b16 %v495
    %v592 = vunpack.c.l.b16 %v496
    %v593 = vunpack.c.h.b16 %v496
    %v594 = vunpack.c.l.b16 %v497
    %v595 = vunpack.c.h.b16 %v497
    %v596 = vunpack.c.l.b16 %v498
    %v597 = vunpack.c.h.b16 %v498
    %v598 = vunpack.c.l.b16 %v499
    %v599 = vunpack.c.h.b16 %v499
    %v600 = vunpack.c.l.b16 %v500
    %v601 = vunpack.c.h.b16 %v500
    %v602 = vunpack.c.l.b16 %v501
    %v603 = vunpack.c.h.b16 %v501
    %v604 = vunpack.c.l.b16 %v502
    %v605 = vunpack.c.h.b16 %v502
    %v606 = vunpack.c.l.b16 %v503
    %v607 = vunpack.c.h.b16 %v503
    %v608 = vunpack.c.l.b16 %v504
    %v609 = vunpack.c.h.b16 %v504
    %v610 = vunpack.c.l.b16 %v505
    %v611 = vunpack.c.h.b16 %v505
    %v612 = vunpack.c.l.b16 %v506
    %v613 = vunpack.c.h.b16 %v506
    %v614 = vunpack.c.l.b16 %v507
    %v615 = vunpack.c.h.b16 %v507
    %v616 = vpack.c.b16 %v554, %v552
    %v617 = vpack.c.b16 %v555, %v553
    %v618 = vpack.c.b16 %v558, %v556
    %v619 = vpack.c.b16 %v559, %v557
    %v620 = vpack.c.b16 %v562, %v560
    %v621 = vpack.c.b16 %v563, %v561
    %v622 = vpack.c.b16 %v566, %v564
    %v623 = vpack.c.b16 %v567, %v565
    %v624 = vpack.c.b16 %v570, %v568
    %v625 = vpack.c.b16 %v571, %v569
    %v626 = vpack.c.b16 %v574, %v572
    %v627 = vpack.c.b16 %v575, %v573
    %v628 = vpack.c.b16 %v578, %v576
    %v629 = vpack.c.b16 %v579, %v577
    %v630 = vpack.c.b16 %v582, %v580
    %v631 = vpack.c.b16 %v583, %v581
    %v632 = vpack.c.b16 %v586, %v584
    %v633 = vpack.c.b16 %v587, %v585
    %v634 = vpack.c.b16 %v590, %v588
    %v635 = vpack.c.b16 %v591, %v589
    %v636 = vpack.c.b16 %v594, %v592
    %v637 = vpack.c.b16 %v595, %v593
    %v638 = vpack.c.b16 %v598, %v596
    %v639 = vpack.c.b16 %v599, %v597
    %v640 = vpack.c.b16 %v602, %v600
    %v641 = vpack.c.b16 %v603, %v601
    %v642 = vpack.c.b16 %v606, %v604
    %v643 = vpack.c.b16 %v607, %v605
    %v644 = vpack.c.b16 %v610, %v608
    %v645 = vpack.c.b16 %v611, %v609
    %v646 = vpack.c.b16 %v614, %v612
    %v647 = vpack.c.b16 %v615, %v613
    %680 = vmatprep.subr.bf16.mxu0 %v617
    %681 = vmatpush1.bf16.msra.mxu0 %v616
    %682 = vmatprep.subr.bf16.mxu0 %v619
    %683 = vmatpush1.bf16.msra.mxu0 %v618
    %684 = vmatprep.subr.bf16.mxu0 %v621
    %685 = vmatpush1.bf16.msra.mxu0 %v620
    %686 = vmatprep.subr.bf16.mxu0 %v623
    %687 = vmatpush1.bf16.msra.mxu0 %v622
    %688 = vmatprep.subr.bf16.mxu0 %v625
    %689 = vmatpush1.bf16.msra.mxu0 %v624
    %690 = vmatprep.subr.bf16.mxu0 %v627
    %691 = vmatpush1.bf16.msra.mxu0 %v626
    %692 = vmatprep.subr.bf16.mxu0 %v629
    %693 = vmatpush1.bf16.msra.mxu0 %v628
    %694 = vmatprep.subr.bf16.mxu0 %v631
    %695 = vmatpush1.bf16.msra.mxu0 %v630
    %696 = vmatprep.subr.bf16.mxu0 %v633
    %697 = vmatpush1.bf16.msra.mxu0 %v632
    %698 = vmatprep.subr.bf16.mxu0 %v635
    %699 = vmatpush1.bf16.msra.mxu0 %v634
    %700 = vmatprep.subr.bf16.mxu0 %v637
    %701 = vmatpush1.bf16.msra.mxu0 %v636
    %702 = vmatprep.subr.bf16.mxu0 %v639
    %703 = vmatpush1.bf16.msra.mxu0 %v638
    %704 = vmatprep.subr.bf16.mxu0 %v641
    %705 = vmatpush1.bf16.msra.mxu0 %v640
    %706 = vmatprep.subr.bf16.mxu0 %v643
    %707 = vmatpush1.bf16.msra.mxu0 %v642
    %708 = vmatprep.subr.bf16.mxu0 %v645
    %709 = vmatpush1.bf16.msra.mxu0 %v644
    %710 = vmatprep.subr.bf16.mxu0 %v647
    %711 = vmatpush1.bf16.msra.mxu0 %v646
    %712 = vmatprep.mubr.bf16.mxu0 %v230
    %713 = vmatmul.mubr.bf16.gmra.mrb[0].mxu0 %v229
    %v714 = vpop.f32.mrb[0].mxu0
    %v715 = vadd.f32 %v513, %v714
    %v716 = vpop.f32.mrb[0].mxu0
    %v717 = vadd.f32 %v517, %v716
    %v718 = vpop.f32.mrb[0].mxu0
    %v719 = vpop.f32.mrb[0].mxu0
    %720 = vdwg.mxu0
    %v721 = vmax.f32 %v470, 0.0
    %v722 = vmax.f32 %v472, 0.0
    %v723 = vmax.f32 %v715, 0.0
    %v724 = vmax.f32 %v717, 0.0
    %v725 = vld [vmem:[%s7] sm:$0x3]
    %v727 = vlaneseq
    %v728 = vshrl.u32 %v727, 7
    %v729 = vsub.s32 0, %v728
    %v730 = vrot.slane %v725, %v729
    %v731 = vlaneseq
    %v732 = vshrl.u32 %v731, 7
    %v733 = vsub.s32 1, %v732
    %v734 = vrot.slane %v725, %v733
    %v737 = vmul.f32 %v721, %v730
    %v738 = vmul.f32 %v722, %v734
    %v739 = vadd.f32 %v737, %v738
    %740 = vadd.xlane.f32.xlu0 %v739
    %v741 = vpop.xlane.xlu0 %740
    %v742 = vld [vmem:[%s8] sm:$0x3]
    %v744 = vlaneseq
    %v745 = vshrl.u32 %v744, 7
    %v746 = vsub.s32 0, %v745
    %v747 = vrot.slane %v742, %v746
    %v748 = vlaneseq
    %v749 = vshrl.u32 %v748, 7
    %v750 = vsub.s32 1, %v749
    %v751 = vrot.slane %v742, %v750
    %v754 = vmul.f32 %v723, %v747
    %v755 = vmul.f32 %v724, %v751
    %v756 = vadd.f32 %v754, %v755
    %757 = vadd.xlane.f32.xlu0 %v756
    %v758 = vpop.xlane.xlu0 %757
    %v759 = vlaneseq
    %v760 = vand.u32 %v759, 127
    %vm761 = vcmp.eq.s32.totalorder %v760, 0
    %v762 = vsel %vm761, %v741, %v758
    %v763 = vld [vmem:[%s9] sm:$0x1]
    %v765 = vlaneseq
    %v766 = vshrl.u32 %v765, 7
    %v767 = vsub.s32 0, %v766
    %v768 = vrot.slane %v763, %v767
    %v770 = vadd.f32 %v762, %v768
    %vm771 = vcmask 15360
    %772 = vst.msk [vmem:[%s10] sm:$0xff] %vm771, %v770
    // Predicated region
    $region58: #{tpu_custom_call.1} parent=1 // pred_check
      _
    $region59: #{tpu_custom_call.1} parent=1 // pred_check_branch
      %774 = sbr.rel (0) target = $region61
    $region60: #{tpu_custom_call.1} parent=1 // pred_region
      _
    $region61: #{tpu_custom_call.1} parent=1 // pred_fallthru
      _
    // Predicated region
    $region62: #{tpu_custom_call.1} parent=1 // pred_check
      _
    $region63: #{tpu_custom_call.1} parent=1 // pred_check_branch
      %776 = sbr.rel (0) target = $region65
    $region64: #{tpu_custom_call.1} parent=1 // pred_region
      _
    $region65: #{tpu_custom_call.1} parent=1 // pred_fallthru
      _
    %777 = vsyncpa [#allocation3], 1
    %778 = vsyncpa [#allocation5], 1
    %779 = vsyncpa [#allocation8], 1

</llo_original>
